<compile_context>
chip_gen: v7x
topology: tpu7x:2x2x1
jax: 0.10.0
libtpu: 0.0.40
codegen_flags: <defaults>
</compile_context>

<pallas_src>
import math
from functools import partial

import jax
import jax.numpy as jnp
from jax.experimental import pallas as pl
from jax.experimental.pallas import tpu as pltpu


# ---------------------------------------------------------------------------
# in-kernel helpers
# ---------------------------------------------------------------------------
def _ln_standardize(x, eps=1e-5):
    """(x - mean) / sqrt(var + eps) over the last axis, f32 statistics.

    The LayerNorm affine (gamma/beta) is folded into the downstream weights
    on the host, so the kernel only standardizes (matches torch eps=1e-5).
    """
    mu = jnp.mean(x, axis=-1, keepdims=True)
    var = jnp.mean((x - mu) ** 2, axis=-1, keepdims=True)
    return (x - mu) * jax.lax.rsqrt(var + eps)


def _gelu_exact(x):
    # PyTorch nn.GELU() default = exact erf formulation.
    return 0.5 * x * (1.0 + jax.lax.erf(x * (1.0 / math.sqrt(2.0))))


# ---------------------------------------------------------------------------
# kernel 1: fused K|V projection prologue
# ---------------------------------------------------------------------------
def kv_proj_kernel(k_ref, wkv_ref, bkv_ref, kv_ref):
    """kv = standardize(key) @ [gk*Wk | gk*Wv] + [bk@Wk | bk@Wv]   (bf16 out)."""
    kx = k_ref[0].astype(jnp.float32)                       # (Ts, C)
    kn = _ln_standardize(kx).astype(wkv_ref.dtype)
    kv = jnp.dot(kn, wkv_ref[...],
                 preferred_element_type=jnp.float32) + bkv_ref[...]
    kv_ref[0] = kv.astype(kv_ref.dtype)


# ---------------------------------------------------------------------------
# kernel 2: fused attention + MLP block
# ---------------------------------------------------------------------------
def cross_attn_block_kernel(
    # activations (blocked per (batch, query-tile))
    q_ref, kv_ref,
    # folded attention linears (bf16 weights, f32 biases); wq pre-scaled
    wq_ref, bq_ref, wp_ref, bp_ref,
    # folded MLP linears
    w1_ref, b1_ref, w2_ref, b2_ref,
    # output
    o_ref,
    # VMEM scratch: attention context, heads written at their column offsets
    ctx_scr,
    *, num_heads, head_dim, dim,
):
    cdt = wq_ref.dtype                                      # MXU dtype (bf16)

    x = q_ref[0].astype(jnp.float32)                        # (Tn, C) residual

    # --- Q projection (LN_q affine + dh**-0.5 scale folded into wq/bq) ---
    qn = _ln_standardize(x).astype(cdt)
    q = (jnp.dot(qn, wq_ref[...], preferred_element_type=jnp.float32)
         + bq_ref[...]).astype(cdt)                         # (Tn, C)

    kv = kv_ref.at[0]                                       # (S, 2C) bf16 view

    # --- per-head scaled-dot attention; heads are contiguous column blocks ---
    for h in range(num_heads):
        lo = h * head_dim
        hi = lo + head_dim
        qh = q[:, lo:hi]                                    # (Tn, dh)
        kh = kv[:, lo:hi]                                   # (S, dh)
        vh = kv[:, dim + lo:dim + hi]                       # (S, dh)
        # contract last axes of both operands -> no materialized transpose
        logits = jnp.einsum('nd,sd->ns', qh, kh,
                            preferred_element_type=jnp.float32)  # (Tn, S) f32
        m = jnp.max(logits, axis=-1, keepdims=True)
        p = jnp.exp(logits - m)
        denom = jnp.sum(p, axis=-1, keepdims=True)
        p = (p * pl.reciprocal(denom, approx=True)).astype(cdt)
        ctx_scr[:, lo:hi] = jnp.dot(
            p, vh, preferred_element_type=jnp.float32).astype(ctx_scr.dtype)

    # --- output projection + first residual ---
    attn_out = jnp.dot(ctx_scr[...], wp_ref[...],
                       preferred_element_type=jnp.float32) + bp_ref[...]
    x1 = x + attn_out                                       # (Tn, C) f32

    # --- MLP branch + second residual (LN2 affine folded into w1/b1) ---
    xn = _ln_standardize(x1).astype(cdt)
    h1 = jnp.dot(xn, w1_ref[...],
                 preferred_element_type=jnp.float32) + b1_ref[...]
    h1 = _gelu_exact(h1).astype(cdt)
    h2 = jnp.dot(h1, w2_ref[...],
                 preferred_element_type=jnp.float32) + b2_ref[...]

    o_ref[0] = (x1 + h2).astype(o_ref.dtype)


# ---------------------------------------------------------------------------
# wrapper
# ---------------------------------------------------------------------------
def _vmem_limit_bytes(request_bytes):
    """Generation-aware VMEM budget with ~15% headroom for compiler scratch."""
    try:
        cap = int(pltpu.get_tpu_info().vmem_capacity_bytes)
    except Exception:
        cap = 64 << 20          # conservative fallback (works on every gen)
    ceiling = int(cap * 0.85)   # ~54 MiB on v7x, ~109 MiB on v5e/v6e
    floor = min(32 << 20, ceiling)
    return int(max(min(int(request_bytes), ceiling), floor))


def cross_attn_block(query, key, params, *, num_heads, tile_n=None,
                     tile_s=None, compute_dtype=jnp.bfloat16):
    """query: (B, N, C); key: (B, S, C); returns (B, N, C).

    params keys (all "x @ W + b" orientation, i.e. W is (in, out)):
      ln_q_g, ln_q_b, ln_k_g, ln_k_b, ln2_g, ln2_b : (1, C)
      wq, wk, wv, wproj : (C, C);  bproj : (1, C)
      w1 : (C, hidden); b1 : (1, hidden); w2 : (hidden, C); b2 : (1, C)
    """
    B, N, C = query.shape
    _, S, _ = key.shape
    assert C % num_heads == 0, "dim must be divisible by num_heads"
    head_dim = C // num_heads
    hidden = params["w1"].shape[1]

    f32 = jnp.float32
    cdt = compute_dtype
    cdt_size = jnp.dtype(cdt).itemsize
    scale = head_dim ** (-0.5)

    # --- tiling (review: bigger query tiles; default 256 rows) ---
    if tile_n is None:
        tile_n = min(N, 256)
    if N % tile_n != 0:
        tile_n = N
    n_tiles = N // tile_n

    if tile_s is None:
        tile_s = min(S, 512)
    if S % tile_s != 0:
        tile_s = S
    s_tiles = S // tile_s

    # --- host-side folding: LN affine (+ attention scale) into the weights ---
    gq = params["ln_q_g"].astype(f32).reshape(C, 1)
    bq = params["ln_q_b"].astype(f32).reshape(1, C)
    gk = params["ln_k_g"].astype(f32).reshape(C, 1)
    bk = params["ln_k_b"].astype(f32).reshape(1, C)
    g2 = params["ln2_g"].astype(f32).reshape(C, 1)
    be2 = params["ln2_b"].astype(f32).reshape(1, C)

    wq_f = params["wq"].astype(f32)
    wk_f = params["wk"].astype(f32)
    wv_f = params["wv"].astype(f32)
    w1_f = params["w1"].astype(f32)

    wq = (scale * gq * wq_f).astype(cdt)                    # (C, C)
    bq_fold = scale * (bq @ wq_f)                           # (1, C)  f32
    wkv = jnp.concatenate([gk * wk_f, gk * wv_f], axis=1).astype(cdt)  # (C,2C)
    bkv = jnp.concatenate([bk @ wk_f, bk @ wv_f], axis=1)   # (1, 2C) f32
    wp = params["wproj"].astype(cdt)                        # (C, C)
    bp = params["bproj"].astype(f32).reshape(1, C)
    w1 = (g2 * w1_f).astype(cdt)                            # (C, hidden)
    b1 = params["b1"].astype(f32).reshape(1, hidden) + be2 @ w1_f
    w2 = params["w2"].astype(cdt)                           # (hidden, C)
    b2 = params["b2"].astype(f32).reshape(1, C)

    # Single-buffered, VMEM-resident constants (no pipeline double-buffering).
    wspec = pl.BlockSpec(memory_space=pltpu.MemorySpace.VMEM)
    act_isz = query.dtype.itemsize

    # ---------------- prologue: fused K|V projection ----------------
    kv_w_bytes = (C * 2 * C) * cdt_size + (2 * C) * 4
    kv_act_bytes = 2 * (tile_s * C * key.dtype.itemsize + tile_s * 2 * C * cdt_size)
    kv_cost = pl.CostEstimate(
        flops=int(2 * B * S * C * 2 * C),
        transcendentals=int(B * S),
        bytes_accessed=int(key.size * key.dtype.itemsize
                           + B * S * 2 * C * cdt_size + kv_w_bytes),
    )
    kv_proj = pl.pallas_call(
        kv_proj_kernel,
        out_shape=jax.ShapeDtypeStruct((B, S, 2 * C), cdt),
        grid=(B, s_tiles),
        in_specs=[
            pl.BlockSpec((1, tile_s, C), lambda b, s: (b, s, 0)),
            wspec,   # wkv (C, 2C)
            wspec,   # bkv (1, 2C)
        ],
        out_specs=pl.BlockSpec((1, tile_s, 2 * C), lambda b, s: (b, s, 0)),
        compiler_params=pltpu.CompilerParams(
            dimension_semantics=("parallel", "parallel"),
            vmem_limit_bytes=_vmem_limit_bytes(
                kv_w_bytes + kv_act_bytes + (8 << 20)),
        ),
        cost_estimate=kv_cost,
    )(key, wkv, bkv)

    # ---------------- main fused attention + MLP kernel ----------------
    kernel = partial(cross_attn_block_kernel,
                     num_heads=num_heads, head_dim=head_dim, dim=C)

    main_w_bytes = (2 * C * C + 2 * C * hidden) * cdt_size + (3 * C + hidden) * 4
    main_act_bytes = 2 * (2 * tile_n * C * act_isz + S * 2 * C * cdt_size)
    main_scr_bytes = tile_n * C * cdt_size
    main_cost = pl.CostEstimate(
        flops=int(B * N * (4 * C * C + 4 * S * C + 4 * C * hidden)),
        transcendentals=int(B * N * (S + hidden + num_heads)),
        bytes_accessed=int(2 * B * N * C * act_isz
                           + B * S * 2 * C * cdt_size + main_w_bytes),
    )

    # NOTE: no scratch state is carried across grid iterations, so both axes
    # are safely "parallel" (megacore / v7x dual-TC can shard either axis).
    return pl.pallas_call(
        kernel,
        out_shape=jax.ShapeDtypeStruct((B, N, C), query.dtype),
        grid=(B, n_tiles),
        in_specs=[
            pl.BlockSpec((1, tile_n, C), lambda b, n: (b, n, 0)),   # query tile
            pl.BlockSpec((1, S, 2 * C), lambda b, n: (b, 0, 0)),    # kv (bf16)
            wspec, wspec,            # wq, bq_fold
            wspec, wspec,            # wproj, bproj
            wspec, wspec,            # w1, b1
            wspec, wspec,            # w2, b2
        ],
        out_specs=pl.BlockSpec((1, tile_n, C), lambda b, n: (b, n, 0)),
        scratch_shapes=[pltpu.VMEM((tile_n, C), cdt)],
        compiler_params=pltpu.CompilerParams(
            dimension_semantics=("parallel", "parallel"),
            vmem_limit_bytes=_vmem_limit_bytes(
                main_w_bytes + main_act_bytes + main_scr_bytes + (16 << 20)),
        ),
        cost_estimate=main_cost,
    )(query, kv_proj, wq, bq_fold, wp, bp, w1, b1, w2, b2)


# ---------------------------------------------------------------------------
# pure-JAX f32 reference mirroring the PyTorch module (unfolded math)
# ---------------------------------------------------------------------------
def reference_forward(query, key, params, *, num_heads):
    B, N, C = query.shape
    S = key.shape[1]
    dh = C // num_heads

    def ln(x, g, b):
        mu = jnp.mean(x, -1, keepdims=True)
        var = jnp.mean((x - mu) ** 2, -1, keepdims=True)
        return (x - mu) / jnp.sqrt(var + 1e-5) * g + b

    qn = ln(query, params["ln_q_g"], params["ln_q_b"])
    kn = ln(key, params["ln_k_g"], params["ln_k_b"])
    q = qn @ params["wq"]
    k = kn @ params["wk"]
    v = kn @ params["wv"]
    q = q.reshape(B, N, num_heads, dh).transpose(0, 2, 1, 3)
    k = k.reshape(B, S, num_heads, dh).transpose(0, 2, 1, 3)
    v = v.reshape(B, S, num_heads, dh).transpose(0, 2, 1, 3)
    attn = (q @ jnp.swapaxes(k, -2, -1)) * (dh ** -0.5)
    attn = jax.nn.softmax(attn, axis=-1)
    out = (attn @ v).transpose(0, 2, 1, 3).reshape(B, N, C)
    out = out @ params["wproj"] + params["bproj"]
    x1 = query + out
    xn = ln(x1, params["ln2_g"], params["ln2_b"])
    h = xn @ params["w1"] + params["b1"]
    h = 0.5 * h * (1.0 + jax.lax.erf(h / jnp.sqrt(2.0)))
    h = h @ params["w2"] + params["b2"]
    return x1 + h


def init_params(rng, dim, mlp_ratio=4.0, dtype=jnp.float32):
    hidden = int(dim * mlp_ratio)
    keys = jax.random.split(rng, 15)
    s = 0.02
    return {
        "ln_q_g": 1.0 + s * jax.random.normal(keys[0], (1, dim), dtype),
        "ln_q_b": s * jax.random.normal(keys[1], (1, dim), dtype),
        "ln_k_g": 1.0 + s * jax.random.normal(keys[2], (1, dim), dtype),
        "ln_k_b": s * jax.random.normal(keys[3], (1, dim), dtype),
        "ln2_g": 1.0 + s * jax.random.normal(keys[4], (1, dim), dtype),
        "ln2_b": s * jax.random.normal(keys[5], (1, dim), dtype),
        "wq": s * jax.random.normal(keys[6], (dim, dim), dtype),
        "wk": s * jax.random.normal(keys[7], (dim, dim), dtype),
        "wv": s * jax.random.normal(keys[8], (dim, dim), dtype),
        "wproj": s * jax.random.normal(keys[9], (dim, dim), dtype),
        "bproj": s * jax.random.normal(keys[10], (1, dim), dtype),
        "w1": s * jax.random.normal(keys[11], (dim, hidden), dtype),
        "b1": s * jax.random.normal(keys[12], (1, hidden), dtype),
        "w2": s * jax.random.normal(keys[13], (hidden, dim), dtype),
        "b2": s * jax.random.normal(keys[14], (1, dim), dtype),   # fc2 bias
    }


if __name__ == "__main__":
    # Lane/MXU-friendly small demo: C multiple of 128, head_dim = 128, sequence
    # dims multiples of 8; N = 512 so the default tile_n = 256 gives a 2-step
    # query-tile axis (exercises the multi-tile path and the kv revisit skip).
    B, N, S, C = 2, 512, 128, 256
    num_heads = 2              # head_dim = 128 -> lane-aligned head slices
    mlp_ratio = 4.0

    root = jax.random.PRNGKey(0)
    k_q, k_k, k_p = jax.random.split(root, 3)

    query = jax.random.normal(k_q, (B, N, C), jnp.float32)
    key_inp = jax.random.normal(k_k, (B, S, C), jnp.float32)
    params = init_params(k_p, C, mlp_ratio=mlp_ratio)

    out = cross_attn_block(query, key_inp, params, num_heads=num_heads,
                           compute_dtype=jnp.bfloat16)
    out = jax.block_until_ready(out)

    ref = reference_forward(query, key_inp, params, num_heads=num_heads)
    ref = jax.block_until_ready(ref)

    assert out.shape == (B, N, C)
    max_err = float(jnp.max(jnp.abs(out - ref)))
    # bf16 MXU operands / weights (+ approx EUP reciprocal) vs pure-f32 ref.
    assert jnp.allclose(out, ref, atol=3e-2, rtol=3e-2), (
        f"max abs err = {max_err}")

    print("KERNEL_OK")
</pallas_src>

<mosaic_0001>
module attributes {stable_mosaic.version = 11 : i64} {
  func.func @kv_proj_kernel(%arg0: i32, %arg1: i32, %arg2: memref<1x128x256xf32, #tpu.memory_space<vmem>>, %arg3: memref<256x512xbf16, #tpu.memory_space<vmem>>, %arg4: memref<1x512xf32, #tpu.memory_space<vmem>>, %arg5: memref<1x128x512xbf16, #tpu.memory_space<vmem>>) attributes {dimension_semantics = [#tpu.dimension_semantics<parallel>, #tpu.dimension_semantics<parallel>], iteration_bounds = array<i64: 2, 1>, scalar_prefetch = 0 : i64, scratch_operands = 0 : i64, tpu.core_type = #tpu.core_type<tc>, window_params = [{transform_indices = @transform_0, window_bounds = array<i64: 1, 128, 256>}, {pipeline_mode = #tpu.pipeline_mode<synchronous>, transform_indices = @transform_1, window_bounds = array<i64: 256, 512>}, {pipeline_mode = #tpu.pipeline_mode<synchronous>, transform_indices = @transform_2, window_bounds = array<i64: 1, 512>}, {transform_indices = @transform_3, window_bounds = array<i64: 1, 128, 512>}]} {
    %c0 = arith.constant 0 : index
    %c0_0 = arith.constant 0 : index
    %c0_1 = arith.constant 0 : index
    %0 = vector.load %arg2[%c0, %c0_0, %c0_1] : memref<1x128x256xf32, #tpu.memory_space<vmem>>, vector<1x128x256xf32>
    %1 = vector.shape_cast %0 : vector<1x128x256xf32> to vector<128x256xf32>
    %cst = arith.constant dense<0.000000e+00> : vector<128xf32>
    %2 = vector.multi_reduction <add>, %1, %cst [1] : vector<128x256xf32> to vector<128xf32>
    %3 = vector.shape_cast %2 : vector<128xf32> to vector<128x1xf32>
    %cst_2 = arith.constant 2.560000e+02 : f32
    %4 = vector.broadcast %cst_2 : f32 to vector<128x1xf32>
    %5 = arith.divf %3, %4 : vector<128x1xf32>
    %6 = vector.broadcast %5 : vector<128x1xf32> to vector<128x256xf32>
    %7 = arith.subf %1, %6 : vector<128x256xf32>
    %8 = arith.mulf %7, %7 : vector<128x256xf32>
    %cst_3 = arith.constant dense<0.000000e+00> : vector<128xf32>
    %9 = vector.multi_reduction <add>, %8, %cst_3 [1] : vector<128x256xf32> to vector<128xf32>
    %10 = vector.shape_cast %9 : vector<128xf32> to vector<128x1xf32>
    %cst_4 = arith.constant 2.560000e+02 : f32
    %11 = vector.broadcast %cst_4 : f32 to vector<128x1xf32>
    %12 = arith.divf %10, %11 : vector<128x1xf32>
    %13 = vector.broadcast %5 : vector<128x1xf32> to vector<128x256xf32>
    %14 = arith.subf %1, %13 : vector<128x256xf32>
    %cst_5 = arith.constant 9.99999974E-6 : f32
    %15 = vector.broadcast %cst_5 : f32 to vector<128x1xf32>
    %16 = arith.addf %12, %15 : vector<128x1xf32>
    %17 = math.rsqrt %16 : vector<128x1xf32>
    %18 = vector.broadcast %17 : vector<128x1xf32> to vector<128x256xf32>
    %19 = arith.mulf %14, %18 : vector<128x256xf32>
    %20 = arith.truncf %19 : vector<128x256xf32> to vector<128x256xbf16>
    %c0_6 = arith.constant 0 : index
    %c0_7 = arith.constant 0 : index
    %21 = vector.load %arg3[%c0_6, %c0_7] : memref<256x512xbf16, #tpu.memory_space<vmem>>, vector<256x512xbf16>
    %cst_8 = arith.constant dense<0.000000e+00> : vector<128x512xf32>
    %22 = tpu.matmul %20, %21, %cst_8 {dimension_numbers = #tpu.dot_dimension_numbers<[1], [0], [0], [1], [0, 0, 1, 1], [], []>} : vector<128x256xbf16>, vector<256x512xbf16>, vector<128x512xf32> -> vector<128x512xf32>
    %c0_9 = arith.constant 0 : index
    %c0_10 = arith.constant 0 : index
    %23 = vector.load %arg4[%c0_9, %c0_10] : memref<1x512xf32, #tpu.memory_space<vmem>>, vector<1x512xf32>
    %24 = vector.broadcast %23 : vector<1x512xf32> to vector<128x512xf32>
    %25 = arith.addf %22, %24 : vector<128x512xf32>
    %26 = arith.truncf %25 : vector<128x512xf32> to vector<128x512xbf16>
    %c0_11 = arith.constant 0 : index
    %c0_12 = arith.constant 0 : index
    %c0_13 = arith.constant 0 : index
    %27 = vector.load %arg5[%c0_11, %c0_12, %c0_13] : memref<1x128x512xbf16, #tpu.memory_space<vmem>>, vector<1x128x512xbf16>
    %28 = vector.shape_cast %27 : vector<1x128x512xbf16> to vector<128x512xbf16>
    %29 = vector.shape_cast %26 : vector<128x512xbf16> to vector<1x128x512xbf16>
    tpu.vector_store %arg5[%c0_11, %c0_12, %c0_13], %29 {strides = array<i32>} : memref<1x128x512xbf16, #tpu.memory_space<vmem>>, vector<1x128x512xbf16>,
    return
  }
  func.func @transform_0(%arg0: i32, %arg1: i32) -> (i32, i32, i32) {
    %c0_i32 = arith.constant 0 : i32
    %c0_i32_0 = arith.constant 0 : i32
    return %arg0, %arg1, %c0_i32 : i32, i32, i32
  }
  func.func @transform_1(%arg0: i32, %arg1: i32) -> (i32, i32) {
    %c0_i32 = arith.constant 0 : i32
    %c0_i32_0 = arith.constant 0 : i32
    %c0_i32_1 = arith.constant 0 : i32
    return %c0_i32, %c0_i32_0 : i32, i32
  }
  func.func @transform_2(%arg0: i32, %arg1: i32) -> (i32, i32) {
    %c0_i32 = arith.constant 0 : i32
    %c0_i32_0 = arith.constant 0 : i32
    %c0_i32_1 = arith.constant 0 : i32
    return %c0_i32, %c0_i32_0 : i32, i32
  }
  func.func @transform_3(%arg0: i32, %arg1: i32) -> (i32, i32, i32) {
    %c0_i32 = arith.constant 0 : i32
    %c0_i32_0 = arith.constant 0 : i32
    return %arg0, %arg1, %c0_i32 : i32, i32, i32
  }
}

</mosaic_0001>

<llo_original>
// kernel: tpu_custom_call.1
$region0: #{tpu_custom_call.1}
  #allocation0 [shape = 'u32[]', space=smem, size = 0x4, offset = 0x4, fixed_abs, tag = 'smem constant byte address 0x4 - core index']
  #allocation1 [shape = 'u32[144,128]{1,0:T(1,128)}', space=vmem, size = 0x12000, scoped, tag = 'internal scratch']
  %s0 = inlined_call_operand.hbm [shape: f32[2,128,256], index: 0, kind: input, shape index: {}]
  %s1 = inlined_call_operand.hbm [shape: bf16[256,512], index: 1, kind: input, shape index: {}]
  %s2 = inlined_call_operand.vmem [shape: f32[1,512], index: 2, kind: input, shape index: {}]
  %s3 = inlined_call_operand.hbm [shape: bf16[2,128,512], index: 3, kind: output, shape index: {}]
  %s4 = sld [smem:[#allocation0]]
  $region53: #{tpu_custom_call.1} parent=0
    _
  %s6 = ssub.s32 1, %s4
  %s7 = scalar_select 0, %s6, %s4
  $region1: #{tpu_custom_call.1} parent=0
    #allocation2 [shape = 'u8[262144]{0}', space=vmem, size = 0x40000, scoped, tag = 'input window, operand 0']
    #allocation3 [shape = 's32[2]{0}', space=sflag, size = 0x8, scoped, tag = 'scoped memory for tpu_custom_call.1']
    #allocation4 [shape = 's32[2]{0}', space=sflag, size = 0x8, scoped, tag = 'scoped memory for tpu_custom_call.1']
    #allocation5 [shape = 'u8[262144]{0}', space=vmem, size = 0x40000, scoped, tag = 'input window, operand 1, single buffered']
    #allocation6 [shape = 's32[1]{0}', space=sflag, size = 0x4, scoped, tag = 'scoped memory for tpu_custom_call.1']
    #allocation7 [shape = 'u8[262144]{0}', space=vmem, size = 0x40000, scoped, tag = 'output window, operand 0']
    %8 = vsyncpa [#allocation3], 0
    %s9 = scalar_lea.sflag [#allocation3], 1
    %10 = vsyncpa %s9, 0
    %11 = vsyncpa [#allocation6], 0
    %12 = vsyncpa [#allocation4], 0
    %s13 = scalar_lea.sflag [#allocation4], 1
    %14 = vsyncpa %s13, 0
    loop: start=0, step=1, limit=4
    $region2: #{tpu_custom_call.1} parent=1 // loop_pre_header
      _
    $region3: #{tpu_custom_call.1} parent=1 // loop_header
      %s16 = sphi 0, %s20
      %p17 = scmp.ge.s32.totalorder %s16, 4
      %s23 = sphi 0, %s35
      %s24 = sphi 0, %s31
      %s25 = sphi 0, %s23
      %s26 = sphi 0, %s24
      %s27 = sphi 0, %s25
      %s28 = sphi 0, %s26
      %s40 = sphi 0, %s42
      %s43 = sphi 0, %s40
      %s44 = sphi 0, %s43
      %s60 = sphi 0, %s44
      %s64 = sphi 0, %s64
      %s66 = sphi 0, %s64
      %s67 = sphi 0, %s66
      %s81 = sphi 0, %s67
      %s85 = sphi 0, %s85
      %s87 = sphi 0, %s85
      %s88 = sphi 0, %s87
      %s102 = sphi 0, %s88
      %s110 = sphi 0, %s112
      %s113 = sphi 0, %s110
      %s114 = sphi 0, %s113
      %s130 = sphi 0, %s114
    $region4: #{tpu_custom_call.1} parent=1 // loop_header_branch
      %19 = sbr.rel (%p17) target = $region8
    $region5: #{tpu_custom_call.1} parent=1 // loop_body
      %s21 = ssub.s32 %s16, 1
      %s22 = ssub.s32 %s16, 2
      %s29 = sadd.s32 1, %s24
      %p30 = scmp.ge.s32.totalorder %s29, 1
      %s31 = scalar_select %p30, 0, %s29
      %s32 = sadd.s32 1, %s23
      %s33 = scalar_select %p30, %s32, %s23
      %p34 = scmp.ge.s32.totalorder %s33, 2
      %s35 = scalar_select %p34, 0, %s33
      %s36 = ssub.s32 %s23, %s35
      %s37 = ssub.s32 %s24, %s31
      %s38 = sor.u32 %s36, %s37
      %p39 = scmp.eq.s32.totalorder %s38, 0
      %s41 = sadd.s32 %s40, 1
      %s42 = scalar_select %p39, %s40, %s41
      %p45 = pneg %p39
      %p46 = scmp.eq.s32.totalorder %s16, 1
      %p47 = por %p45, %p46
      %p48 = scmp.ne.s32.totalorder %s40, %s43
      %p49 = scmp.eq.s32.totalorder %s16, 0
      %p50 = por %p48, %p49
      %p51 = scmp.ne.s32.totalorder %s40, %s43
      %p52 = scmp.eq.s32.totalorder %s21, 1
      %p53 = por %p51, %p52
      %p54 = scmp.ne.s32.totalorder %s43, %s44
      %p55 = scmp.eq.s32.totalorder %s21, 0
      %p56 = por %p54, %p55
      %p57 = scmp.ne.s32.totalorder %s43, %s44
      %p58 = scmp.eq.s32.totalorder %s22, 1
      %p59 = por %p57, %p58
      %p61 = scmp.ne.s32.totalorder %s44, %s60
      %p62 = scmp.eq.s32.totalorder %s22, 0
      %p63 = por %p61, %p62
      %s65 = sadd.s32 %s64, 1
      %p68 = scmp.eq.s32.totalorder %s16, 1
      %p69 = scmp.ne.s32.totalorder %s64, %s66
      %p70 = scmp.eq.s32.totalorder %s16, 0
      %p71 = por %p69, %p70
      %p72 = scmp.ne.s32.totalorder %s64, %s66
      %p73 = scmp.eq.s32.totalorder %s21, 1
      %p74 = por %p72, %p73
      %p75 = scmp.ne.s32.totalorder %s66, %s67
      %p76 = scmp.eq.s32.totalorder %s21, 0
      %p77 = por %p75, %p76
      %p78 = scmp.ne.s32.totalorder %s66, %s67
      %p79 = scmp.eq.s32.totalorder %s22, 1
      %p80 = por %p78, %p79
      %p82 = scmp.ne.s32.totalorder %s67, %s81
      %p83 = scmp.eq.s32.totalorder %s22, 0
      %p84 = por %p82, %p83
      %s86 = sadd.s32 %s85, 1
      %p89 = scmp.eq.s32.totalorder %s16, 1
      %p90 = scmp.ne.s32.totalorder %s85, %s87
      %p91 = scmp.eq.s32.totalorder %s16, 0
      %p92 = por %p90, %p91
      %p93 = scmp.ne.s32.totalorder %s85, %s87
      %p94 = scmp.eq.s32.totalorder %s21, 1
      %p95 = por %p93, %p94
      %p96 = scmp.ne.s32.totalorder %s87, %s88
      %p97 = scmp.eq.s32.totalorder %s21, 0
      %p98 = por %p96, %p97
      %p99 = scmp.ne.s32.totalorder %s87, %s88
      %p100 = scmp.eq.s32.totalorder %s22, 1
      %p101 = por %p99, %p100
      %p103 = scmp.ne.s32.totalorder %s88, %s102
      %p104 = scmp.eq.s32.totalorder %s22, 0
      %p105 = por %p103, %p104
      %s106 = ssub.s32 %s23, %s35
      %s107 = ssub.s32 %s24, %s31
      %s108 = sor.u32 %s106, %s107
      %p109 = scmp.eq.s32.totalorder %s108, 0
      %s111 = sadd.s32 %s110, 1
      %s112 = scalar_select %p109, %s110, %s111
      %p115 = pneg %p109
      %p116 = scmp.eq.s32.totalorder %s16, 1
      %p117 = por %p115, %p116
      %p118 = scmp.ne.s32.totalorder %s110, %s113
      %p119 = scmp.eq.s32.totalorder %s16, 0
      %p120 = por %p118, %p119
      %p121 = scmp.ne.s32.totalorder %s110, %s113
      %p122 = scmp.eq.s32.totalorder %s21, 1
      %p123 = por %p121, %p122
      %p124 = scmp.ne.s32.totalorder %s113, %s114
      %p125 = scmp.eq.s32.totalorder %s21, 0
      %p126 = por %p124, %p125
      %p127 = scmp.ne.s32.totalorder %s113, %s114
      %p128 = scmp.eq.s32.totalorder %s22, 1
      %p129 = por %p127, %p128
      %p131 = scmp.ne.s32.totalorder %s114, %s130
      %p132 = scmp.eq.s32.totalorder %s22, 0
      %p133 = por %p131, %p132
      %p134 = scmp.le.s32.totalorder 1, %s16
      %p135 = scmp.lt.s32.totalorder %s16, 3
      %p136 = pnand %p134, %p135
      %p137 = pneg %p136
      // Predicated region
      $region9: #{tpu_custom_call.1} parent=5 // pred_check
        _
      $region10: #{tpu_custom_call.1} parent=5 // pred_check_branch
        %139 = sbr.rel (%p136) target = $region12
      $region11: #{tpu_custom_call.1} parent=5 // pred_region
        %s140 = ssub.s32 %s16, 1
        // Predicated region
        $region13: #{tpu_custom_call.1} parent=11 // pred_check
          %p141 = pneg %p77
        $region14: #{tpu_custom_call.1} parent=11 // pred_check_branch
          %143 = sbr.rel (%p141) target = $region16
        $region15: #{tpu_custom_call.1} parent=11 // pred_region
          %s145 = ssub.s32 8192, 8192
          %146 = vsyncadd [#allocation6], %s145
          %s147 = sshll.u32 [#allocation5], 4
          %s148 = int_to_ptr.vmem [resolvable:$true] %s147
          %153 = dma.hbm_to_vmem [thread:$0]  %s1, 8192, %s148, [#allocation6], 256, 256, 16
        $region16: #{tpu_custom_call.1} parent=11 // pred_fallthru
          _
        // Predicated region
        $region17: #{tpu_custom_call.1} parent=11 // pred_check
          %p154 = pneg %p98
        $region18: #{tpu_custom_call.1} parent=11 // pred_check_branch
          %156 = sbr.rel (%p154) target = $region20
        $region19: #{tpu_custom_call.1} parent=11 // pred_region
          _
        $region20: #{tpu_custom_call.1} parent=11 // pred_fallthru
          _
      $region12: #{tpu_custom_call.1} parent=5 // pred_fallthru
        _
      %p157 = scmp.lt.s32.totalorder %s16, 2
      // Predicated region
      $region21: #{tpu_custom_call.1} parent=5 // pred_check
        %p158 = pneg %p157
      $region22: #{tpu_custom_call.1} parent=5 // pred_check_branch
        %160 = sbr.rel (%p158) target = $region24
      $region23: #{tpu_custom_call.1} parent=5 // pred_region
        // Predicated region
        $region25: #{tpu_custom_call.1} parent=23 // pred_check
          %p161 = pneg %p50
        $region26: #{tpu_custom_call.1} parent=23 // pred_check_branch
          %163 = sbr.rel (%p161) target = $region28
        $region27: #{tpu_custom_call.1} parent=23 // pred_region
          %s164 = sand.u32 %s40, 1
          %s165 = scalar_lea.sflag [#allocation3], %s164
          %s166 = sand.u32 %s40, 1
          %s167 = smul.addr %s166, 256
          %s168 = scalar_lea.vmem [#allocation2], %s167
          %s169 = smul.u32 16, %s24
          %s171 = ssub.s32 4096, 4096
          %172 = vsyncadd %s165, %s171
          %s173 = smul.addr %s169, 2
          %s174 = smul.addr %s23, 32
          %s175 = sadd.s32 %s173, %s174
          %s176 = smul.addr %s175, 128
          %s177 = scalar_lea.hbm %s0, %s176
          %s178 = sshll.u32 %s168, 4
          %s179 = int_to_ptr.vmem [resolvable:$true] %s178
          %184 = dma.hbm_to_vmem [thread:$0]  %s177, 4096, %s179, %s165, 256, 256, 16
        $region28: #{tpu_custom_call.1} parent=23 // pred_fallthru
          _
      $region24: #{tpu_custom_call.1} parent=5 // pred_fallthru
        _
      %p185 = scmp.le.s32.totalorder 1, %s16
      %p186 = scmp.lt.s32.totalorder %s16, 3
      %p187 = pnand %p185, %p186
      %p188 = pneg %p187
      // Predicated region
      $region29: #{tpu_custom_call.1} parent=5 // pred_check
        _
      $region30: #{tpu_custom_call.1} parent=5 // pred_check_branch
        %190 = sbr.rel (%p187) target = $region32
      $region31: #{tpu_custom_call.1} parent=5 // pred_region
        %s191 = ssub.s32 %s16, 1
        %s192 = sand.u32 %s43, 1
        %s193 = scalar_lea.sflag [#allocation3], %s192
        %s194 = sand.u32 %s43, 1
        %s195 = smul.addr %s194, 256
        %s196 = scalar_lea.vmem [#allocation2], %s195
        // Predicated region
        $region33: #{tpu_custom_call.1} parent=31 // pred_check
          %p197 = pneg %p56
        $region34: #{tpu_custom_call.1} parent=31 // pred_check_branch
          %199 = sbr.rel (%p197) target = $region36
        $region35: #{tpu_custom_call.1} parent=31 // pred_region
          %200 = dma.done %s193, 4096
        $region36: #{tpu_custom_call.1} parent=31 // pred_fallthru
          _
        // Predicated region
        $region37: #{tpu_custom_call.1} parent=31 // pred_check
          %p201 = pneg %p77
        $region38: #{tpu_custom_call.1} parent=31 // pred_check_branch
          %203 = sbr.rel (%p201) target = $region40
        $region39: #{tpu_custom_call.1} parent=31 // pred_region
          %204 = dma.done [#allocation6], 8192
        $region40: #{tpu_custom_call.1} parent=31 // pred_fallthru
          _
        %s205 = sand.u32 %s43, 1
        %s206 = scalar_lea.sflag [#allocation3], %s205
        %s207 = sand.u32 %s43, 1
        %s208 = smul.addr %s207, 256
        %s209 = scalar_lea.vmem [#allocation2], %s208
        %p210 = pneg %p56
        %p211 = pneg %p53
        %p212 = pneg %p77
        %p213 = pneg %p74
        %p214 = pneg %p98
        %p215 = pneg %p95
        %p216 = pneg %p126
        %p217 = pneg %p123
        %s218 = sand.u32 %s113, 1
        %s219 = scalar_lea.sflag [#allocation4], %s218
        %s220 = sand.u32 %s113, 1
        %s221 = smul.addr %s220, 256
        %s222 = scalar_lea.vmem [#allocation7], %s221
        %s223 = smul.u32 16, %s26
        %s224 = smul.u32 16, %s26
        %v225 = vld [vmem:[%s196] sm:$0xff]
        %v226 = vld [vmem:[%s196 + $0x8] sm:$0xff]
        %v227 = vld [vmem:[%s196 + $0x10] sm:$0xff]
        %v228 = vld [vmem:[%s196 + $0x18] sm:$0xff]
        %v229 = vld [vmem:[%s196 + $0x20] sm:$0xff]
        %v230 = vld [vmem:[%s196 + $0x28] sm:$0xff]
        %v231 = vld [vmem:[%s196 + $0x30] sm:$0xff]
        %v232 = vld [vmem:[%s196 + $0x38] sm:$0xff]
        %v233 = vld [vmem:[%s196 + $0x40] sm:$0xff]
        %v234 = vld [vmem:[%s196 + $0x48] sm:$0xff]
        %v235 = vld [vmem:[%s196 + $0x50] sm:$0xff]
        %v236 = vld [vmem:[%s196 + $0x58] sm:$0xff]
        %v237 = vld [vmem:[%s196 + $0x60] sm:$0xff]
        %v238 = vld [vmem:[%s196 + $0x68] sm:$0xff]
        %v239 = vld [vmem:[%s196 + $0x70] sm:$0xff]
        %v240 = vld [vmem:[%s196 + $0x78] sm:$0xff]
        %v241 = vld [vmem:[%s196 + $0x80] sm:$0xff]
        %v242 = vld [vmem:[%s196 + $0x88] sm:$0xff]
        %v243 = vld [vmem:[%s196 + $0x90] sm:$0xff]
        %v244 = vld [vmem:[%s196 + $0x98] sm:$0xff]
        %v245 = vld [vmem:[%s196 + $0xa0] sm:$0xff]
        %v246 = vld [vmem:[%s196 + $0xa8] sm:$0xff]
        %v247 = vld [vmem:[%s196 + $0xb0] sm:$0xff]
        %v248 = vld [vmem:[%s196 + $0xb8] sm:$0xff]
        %v249 = vld [vmem:[%s196 + $0xc0] sm:$0xff]
        %v250 = vld [vmem:[%s196 + $0xc8] sm:$0xff]
        %v251 = vld [vmem:[%s196 + $0xd0] sm:$0xff]
        %v252 = vld [vmem:[%s196 + $0xd8] sm:$0xff]
        %v253 = vld [vmem:[%s196 + $0xe0] sm:$0xff]
        %v254 = vld [vmem:[%s196 + $0xe8] sm:$0xff]
        %v255 = vld [vmem:[%s196 + $0xf0] sm:$0xff]
        %v256 = vld [vmem:[%s196 + $0xf8] sm:$0xff]
        %v257 = vadd.f32 %v225, %v226
        %258 = vadd.xlane.f32.xlu0 %v257
        %v259 = vpop.xlane.xlu0 %258
        %v260 = vadd.f32 %v227, %v228
        %261 = vadd.xlane.f32.xlu0 %v260
        %v262 = vpop.xlane.xlu0 %261
        %v263 = vadd.f32 %v229, %v230
        %264 = vadd.xlane.f32.xlu0 %v263
        %v265 = vpop.xlane.xlu0 %264
        %v266 = vadd.f32 %v231, %v232
        %267 = vadd.xlane.f32.xlu0 %v266
        %v268 = vpop.xlane.xlu0 %267
        %v269 = vadd.f32 %v233, %v234
        %270 = vadd.xlane.f32.xlu0 %v269
        %v271 = vpop.xlane.xlu0 %270
        %v272 = vadd.f32 %v235, %v236
        %273 = vadd.xlane.f32.xlu0 %v272
        %v274 = vpop.xlane.xlu0 %273
        %v275 = vadd.f32 %v237, %v238
        %276 = vadd.xlane.f32.xlu0 %v275
        %v277 = vpop.xlane.xlu0 %276
        %v278 = vadd.f32 %v239, %v240
        %279 = vadd.xlane.f32.xlu0 %v278
        %v280 = vpop.xlane.xlu0 %279
        %v281 = vadd.f32 %v241, %v242
        %282 = vadd.xlane.f32.xlu0 %v281
        %v283 = vpop.xlane.xlu0 %282
        %v284 = vadd.f32 %v243, %v244
        %285 = vadd.xlane.f32.xlu0 %v284
        %v286 = vpop.xlane.xlu0 %285
        %v287 = vadd.f32 %v245, %v246
        %288 = vadd.xlane.f32.xlu0 %v287
        %v289 = vpop.xlane.xlu0 %288
        %v290 = vadd.f32 %v247, %v248
        %291 = vadd.xlane.f32.xlu0 %v290
        %v292 = vpop.xlane.xlu0 %291
        %v293 = vadd.f32 %v249, %v250
        %294 = vadd.xlane.f32.xlu0 %v293
        %v295 = vpop.xlane.xlu0 %294
        %v296 = vadd.f32 %v251, %v252
        %297 = vadd.xlane.f32.xlu0 %v296
        %v298 = vpop.xlane.xlu0 %297
        %v299 = vadd.f32 %v253, %v254
        %300 = vadd.xlane.f32.xlu0 %v299
        %v301 = vpop.xlane.xlu0 %300
        %v302 = vadd.f32 %v255, %v256
        %303 = vadd.xlane.f32.xlu0 %v302
        %v304 = vpop.xlane.xlu0 %303
        %v305 = vrcp.pop 256.0
        %v306 = vmul.f32 %v259, %v305
        %v307 = vmul.f32 %v262, %v305
        %v308 = vmul.f32 %v265, %v305
        %v309 = vmul.f32 %v268, %v305
        %v310 = vmul.f32 %v271, %v305
        %v311 = vmul.f32 %v274, %v305
        %v312 = vmul.f32 %v277, %v305
        %v313 = vmul.f32 %v280, %v305
        %v314 = vmul.f32 %v283, %v305
        %v315 = vmul.f32 %v286, %v305
        %v316 = vmul.f32 %v289, %v305
        %v317 = vmul.f32 %v292, %v305
        %v318 = vmul.f32 %v295, %v305
        %v319 = vmul.f32 %v298, %v305
        %v320 = vmul.f32 %v301, %v305
        %v321 = vmul.f32 %v304, %v305
        %v322 = vsub.f32 %v225, %v306
        %v323 = vsub.f32 %v226, %v306
        %v324 = vsub.f32 %v227, %v307
        %v325 = vsub.f32 %v228, %v307
        %v326 = vsub.f32 %v229, %v308
        %v327 = vsub.f32 %v230, %v308
        %v328 = vsub.f32 %v231, %v309
        %v329 = vsub.f32 %v232, %v309
        %v330 = vsub.f32 %v233, %v310
        %v331 = vsub.f32 %v234, %v310
        %v332 = vsub.f32 %v235, %v311
        %v333 = vsub.f32 %v236, %v311
        %v334 = vsub.f32 %v237, %v312
        %v335 = vsub.f32 %v238, %v312
        %v336 = vsub.f32 %v239, %v313
        %v337 = vsub.f32 %v240, %v313
        %v338 = vsub.f32 %v241, %v314
        %v339 = vsub.f32 %v242, %v314
        %v340 = vsub.f32 %v243, %v315
        %v341 = vsub.f32 %v244, %v315
        %v342 = vsub.f32 %v245, %v316
        %v343 = vsub.f32 %v246, %v316
        %v344 = vsub.f32 %v247, %v317
        %v345 = vsub.f32 %v248, %v317
        %v346 = vsub.f32 %v249, %v318
        %v347 = vsub.f32 %v250, %v318
        %v348 = vsub.f32 %v251, %v319
        %v349 = vsub.f32 %v252, %v319
        %v350 = vsub.f32 %v253, %v320
        %v351 = vsub.f32 %v254, %v320
        %v352 = vsub.f32 %v255, %v321
        %v353 = vsub.f32 %v256, %v321
        %v354 = vmul.f32 %v322, %v322
        %v355 = vmul.f32 %v323, %v323
        %v356 = vmul.f32 %v324, %v324
        %v357 = vmul.f32 %v325, %v325
        %v358 = vmul.f32 %v326, %v326
        %v359 = vmul.f32 %v327, %v327
        %v360 = vmul.f32 %v328, %v328
        %v361 = vmul.f32 %v329, %v329
        %v362 = vmul.f32 %v330, %v330
        %v363 = vmul.f32 %v331, %v331
        %v364 = vmul.f32 %v332, %v332
        %v365 = vmul.f32 %v333, %v333
        %v366 = vmul.f32 %v334, %v334
        %v367 = vmul.f32 %v335, %v335
        %v368 = vmul.f32 %v336, %v336
        %v369 = vmul.f32 %v337, %v337
        %v370 = vmul.f32 %v338, %v338
        %v371 = vmul.f32 %v339, %v339
        %v372 = vmul.f32 %v340, %v340
        %v373 = vmul.f32 %v341, %v341
        %v374 = vmul.f32 %v342, %v342
        %v375 = vmul.f32 %v343, %v343
        %v376 = vmul.f32 %v344, %v344
        %v377 = vmul.f32 %v345, %v345
        %v378 = vmul.f32 %v346, %v346
        %v379 = vmul.f32 %v347, %v347
        %v380 = vmul.f32 %v348, %v348
        %v381 = vmul.f32 %v349, %v349
        %v382 = vmul.f32 %v350, %v350
        %v383 = vmul.f32 %v351, %v351
        %v384 = vmul.f32 %v352, %v352
        %v385 = vmul.f32 %v353, %v353
        %v386 = vadd.f32 %v354, %v355
        %387 = vadd.xlane.f32.xlu0 %v386
        %v388 = vpop.xlane.xlu0 %387
        %v389 = vadd.f32 %v356, %v357
        %390 = vadd.xlane.f32.xlu0 %v389
        %v391 = vpop.xlane.xlu0 %390
        %v392 = vadd.f32 %v358, %v359
        %393 = vadd.xlane.f32.xlu0 %v392
        %v394 = vpop.xlane.xlu0 %393
        %v395 = vadd.f32 %v360, %v361
        %396 = vadd.xlane.f32.xlu0 %v395
        %v397 = vpop.xlane.xlu0 %396
        %v398 = vadd.f32 %v362, %v363
        %399 = vadd.xlane.f32.xlu0 %v398
        %v400 = vpop.xlane.xlu0 %399
        %v401 = vadd.f32 %v364, %v365
        %402 = vadd.xlane.f32.xlu0 %v401
        %v403 = vpop.xlane.xlu0 %402
        %v404 = vadd.f32 %v366, %v367
        %405 = vadd.xlane.f32.xlu0 %v404
        %v406 = vpop.xlane.xlu0 %405
        %v407 = vadd.f32 %v368, %v369
        %408 = vadd.xlane.f32.xlu0 %v407
        %v409 = vpop.xlane.xlu0 %408
        %v410 = vadd.f32 %v370, %v371
        %411 = vadd.xlane.f32.xlu0 %v410
        %v412 = vpop.xlane.xlu0 %411
        %v413 = vadd.f32 %v372, %v373
        %414 = vadd.xlane.f32.xlu0 %v413
        %v415 = vpop.xlane.xlu0 %414
        %v416 = vadd.f32 %v374, %v375
        %417 = vadd.xlane.f32.xlu0 %v416
        %v418 = vpop.xlane.xlu0 %417
        %v419 = vadd.f32 %v376, %v377
        %420 = vadd.xlane.f32.xlu0 %v419
        %v421 = vpop.xlane.xlu0 %420
        %v422 = vadd.f32 %v378, %v379
        %423 = vadd.xlane.f32.xlu0 %v422
        %v424 = vpop.xlane.xlu0 %423
        %v425 = vadd.f32 %v380, %v381
        %426 = vadd.xlane.f32.xlu0 %v425
        %v427 = vpop.xlane.xlu0 %426
        %v428 = vadd.f32 %v382, %v383
        %429 = vadd.xlane.f32.xlu0 %v428
        %v430 = vpop.xlane.xlu0 %429
        %v431 = vadd.f32 %v384, %v385
        %432 = vadd.xlane.f32.xlu0 %v431
        %v433 = vpop.xlane.xlu0 %432
        %v434 = vmul.f32 %v388, %v305
        %v435 = vmul.f32 %v391, %v305
        %v436 = vmul.f32 %v394, %v305
        %v437 = vmul.f32 %v397, %v305
        %v438 = vmul.f32 %v400, %v305
        %v439 = vmul.f32 %v403, %v305
        %v440 = vmul.f32 %v406, %v305
        %v441 = vmul.f32 %v409, %v305
        %v442 = vmul.f32 %v412, %v305
        %v443 = vmul.f32 %v415, %v305
        %v444 = vmul.f32 %v418, %v305
        %v445 = vmul.f32 %v421, %v305
        %v446 = vmul.f32 %v424, %v305
        %v447 = vmul.f32 %v427, %v305
        %v448 = vmul.f32 %v430, %v305
        %v449 = vmul.f32 %v433, %v305
        %v450 = vadd.f32 %v434, 1e-05
        %v451 = vadd.f32 %v435, 1e-05
        %v452 = vadd.f32 %v436, 1e-05
        %v453 = vadd.f32 %v437, 1e-05
        %v454 = vadd.f32 %v438, 1e-05
        %v455 = vadd.f32 %v439, 1e-05
        %v456 = vadd.f32 %v440, 1e-05
        %v457 = vadd.f32 %v441, 1e-05
        %v458 = vadd.f32 %v442, 1e-05
        %v459 = vadd.f32 %v443, 1e-05
        %v460 = vadd.f32 %v444, 1e-05
        %v461 = vadd.f32 %v445, 1e-05
        %v462 = vadd.f32 %v446, 1e-05
        %v463 = vadd.f32 %v447, 1e-05
        %v464 = vadd.f32 %v448, 1e-05
        %v465 = vadd.f32 %v449, 1e-05
        %v466 = vrsqrt.pop %v450
        %v467 = vrsqrt.pop %v451
        %v468 = vrsqrt.pop %v452
        %v469 = vrsqrt.pop %v453
        %v470 = vrsqrt.pop %v454
        %v471 = vrsqrt.pop %v455
        %v472 = vrsqrt.pop %v456
        %v473 = vrsqrt.pop %v457
        %v474 = vrsqrt.pop %v458
        %v475 = vrsqrt.pop %v459
        %v476 = vrsqrt.pop %v460
        %v477 = vrsqrt.pop %v461
        %v478 = vrsqrt.pop %v462
        %v479 = vrsqrt.pop %v463
        %v480 = vrsqrt.pop %v464
        %v481 = vrsqrt.pop %v465
        %v482 = vmul.f32 %v322, %v466
        %v483 = vmul.f32 %v323, %v466
        %v484 = vmul.f32 %v324, %v467
        %v485 = vmul.f32 %v325, %v467
        %v486 = vmul.f32 %v326, %v468
        %v487 = vmul.f32 %v327, %v468
        %v488 = vmul.f32 %v328, %v469
        %v489 = vmul.f32 %v329, %v469
        %v490 = vmul.f32 %v330, %v470
        %v491 = vmul.f32 %v331, %v470
        %v492 = vmul.f32 %v332, %v471
        %v493 = vmul.f32 %v333, %v471
        %v494 = vmul.f32 %v334, %v472
        %v495 = vmul.f32 %v335, %v472
        %v496 = vmul.f32 %v336, %v473
        %v497 = vmul.f32 %v337, %v473
        %v498 = vmul.f32 %v338, %v474
        %v499 = vmul.f32 %v339, %v474
        %v500 = vmul.f32 %v340, %v475
        %v501 = vmul.f32 %v341, %v475
        %v502 = vmul.f32 %v342, %v476
        %v503 = vmul.f32 %v343, %v476
        %v504 = vmul.f32 %v344, %v477
        %v505 = vmul.f32 %v345, %v477
        %v506 = vmul.f32 %v346, %v478
        %v507 = vmul.f32 %v347, %v478
        %v508 = vmul.f32 %v348, %v479
        %v509 = vmul.f32 %v349, %v479
        %v510 = vmul.f32 %v350, %v480
        %v511 = vmul.f32 %v351, %v480
        %v512 = vmul.f32 %v352, %v481
        %v513 = vmul.f32 %v353, %v481
        %v514 = vpack.c.bf16 %v484, %v482
        %v515 = vpack.c.bf16 %v485, %v483
        %v516 = vpack.c.bf16 %v488, %v486
        %v517 = vpack.c.bf16 %v489, %v487
        %v518 = vpack.c.bf16 %v492, %v490
        %v519 = vpack.c.bf16 %v493, %v491
        %v520 = vpack.c.bf16 %v496, %v494
        %v521 = vpack.c.bf16 %v497, %v495
        %v522 = vpack.c.bf16 %v500, %v498
        %v523 = vpack.c.bf16 %v501, %v499
        %v524 = vpack.c.bf16 %v504, %v502
        %v525 = vpack.c.bf16 %v505, %v503
        %v526 = vpack.c.bf16 %v508, %v506
        %v527 = vpack.c.bf16 %v509, %v507
        %v528 = vpack.c.bf16 %v512, %v510
        %v529 = vpack.c.bf16 %v513, %v511
        %v530 = vld [vmem:[#allocation5] sm:$0xff]
        %v531 = vld [vmem:[#allocation5 + $0x8] sm:$0xff]
        %v532 = vld [vmem:[#allocation5 + $0x10] sm:$0xff]
        %v533 = vld [vmem:[#allocation5 + $0x18] sm:$0xff]
        %v534 = vld [vmem:[#allocation5 + $0x20] sm:$0xff]
        %v535 = vld [vmem:[#allocation5 + $0x28] sm:$0xff]
        %v536 = vld [vmem:[#allocation5 + $0x30] sm:$0xff]
        %v537 = vld [vmem:[#allocation5 + $0x38] sm:$0xff]
        %v538 = vld [vmem:[#allocation5 + $0x40] sm:$0xff]
        %v539 = vld [vmem:[#allocation5 + $0x48] sm:$0xff]
        %v540 = vld [vmem:[#allocation5 + $0x50] sm:$0xff]
        %v541 = vld [vmem:[#allocation5 + $0x58] sm:$0xff]
        %v542 = vld [vmem:[#allocation5 + $0x60] sm:$0xff]
        %v543 = vld [vmem:[#allocation5 + $0x68] sm:$0xff]
        %v544 = vld [vmem:[#allocation5 + $0x70] sm:$0xff]
        %v545 = vld [vmem:[#allocation5 + $0x78] sm:$0xff]
        %v546 = vld [vmem:[#allocation5 + $0x80] sm:$0xff]
        %v547 = vld [vmem:[#allocation5 + $0x88] sm:$0xff]
        %v548 = vld [vmem:[#allocation5 + $0x90] sm:$0xff]
        %v549 = vld [vmem:[#allocation5 + $0x98] sm:$0xff]
        %v550 = vld [vmem:[#allocation5 + $0xa0] sm:$0xff]
        %v551 = vld [vmem:[#allocation5 + $0xa8] sm:$0xff]
        %v552 = vld [vmem:[#allocation5 + $0xb0] sm:$0xff]
        %v553 = vld [vmem:[#allocation5 + $0xb8] sm:$0xff]
        %v554 = vld [vmem:[#allocation5 + $0xc0] sm:$0xff]
        %v555 = vld [vmem:[#allocation5 + $0xc8] sm:$0xff]
        %v556 = vld [vmem:[#allocation5 + $0xd0] sm:$0xff]
        %v557 = vld [vmem:[#allocation5 + $0xd8] sm:$0xff]
        %v558 = vld [vmem:[#allocation5 + $0xe0] sm:$0xff]
        %v559 = vld [vmem:[#allocation5 + $0xe8] sm:$0xff]
        %v560 = vld [vmem:[#allocation5 + $0xf0] sm:$0xff]
        %v561 = vld [vmem:[#allocation5 + $0xf8] sm:$0xff]
        %v562 = vld [vmem:[#allocation5 + $0x100] sm:$0xff]
        %v563 = vld [vmem:[#allocation5 + $0x108] sm:$0xff]
        %v564 = vld [vmem:[#allocation5 + $0x110] sm:$0xff]
        %v565 = vld [vmem:[#allocation5 + $0x118] sm:$0xff]
        %v566 = vld [vmem:[#allocation5 + $0x120] sm:$0xff]
        %v567 = vld [vmem:[#allocation5 + $0x128] sm:$0xff]
        %v568 = vld [vmem:[#allocation5 + $0x130] sm:$0xff]
        %v569 = vld [vmem:[#allocation5 + $0x138] sm:$0xff]
        %v570 = vld [vmem:[#allocation5 + $0x140] sm:$0xff]
        %v571 = vld [vmem:[#allocation5 + $0x148] sm:$0xff]
        %v572 = vld [vmem:[#allocation5 + $0x150] sm:$0xff]
        %v573 = vld [vmem:[#allocation5 + $0x158] sm:$0xff]
        %v574 = vld [vmem:[#allocation5 + $0x160] sm:$0xff]
        %v575 = vld [vmem:[#allocation5 + $0x168] sm:$0xff]
        %v576 = vld [vmem:[#allocation5 + $0x170] sm:$0xff]
        %v577 = vld [vmem:[#allocation5 + $0x178] sm:$0xff]
        %v578 = vld [vmem:[#allocation5 + $0x180] sm:$0xff]
        %v579 = vld [vmem:[#allocation5 + $0x188] sm:$0xff]
        %v580 = vld [vmem:[#allocation5 + $0x190] sm:$0xff]
        %v581 = vld [vmem:[#allocation5 + $0x198] sm:$0xff]
        %v582 = vld [vmem:[#allocation5 + $0x1a0] sm:$0xff]
        %v583 = vld [vmem:[#allocation5 + $0x1a8] sm:$0xff]
        %v584 = vld [vmem:[#allocation5 + $0x1b0] sm:$0xff]
        %v585 = vld [vmem:[#allocation5 + $0x1b8] sm:$0xff]
        %v586 = vld [vmem:[#allocation5 + $0x1c0] sm:$0xff]
        %v587 = vld [vmem:[#allocation5 + $0x1c8] sm:$0xff]
        %v588 = vld [vmem:[#allocation5 + $0x1d0] sm:$0xff]
        %v589 = vld [vmem:[#allocation5 + $0x1d8] sm:$0xff]
        %v590 = vld [vmem:[#allocation5 + $0x1e0] sm:$0xff]
        %v591 = vld [vmem:[#allocation5 + $0x1e8] sm:$0xff]
        %v592 = vld [vmem:[#allocation5 + $0x1f0] sm:$0xff]
        %v593 = vld [vmem:[#allocation5 + $0x1f8] sm:$0xff]
        %v594 = vld [vmem:[%s2] sm:$0xf]
        %v596 = vlaneseq
        %v597 = vshrl.u32 %v596, 7
        %v598 = vsub.s32 0, %v597
        %v599 = vrot.slane %v594, %v598
        %v600 = vlaneseq
        %v601 = vshrl.u32 %v600, 7
        %v602 = vsub.s32 1, %v601
        %v603 = vrot.slane %v594, %v602
        %v604 = vlaneseq
        %v605 = vshrl.u32 %v604, 7
        %v606 = vsub.s32 2, %v605
        %v607 = vrot.slane %v594, %v606
        %v608 = vlaneseq
        %v609 = vshrl.u32 %v608, 7
        %v610 = vsub.s32 3, %v609
        %v611 = vrot.slane %v594, %v610
        %v680 = vunpack.c.l.b16 %v530
        %v681 = vunpack.c.h.b16 %v530
        %v682 = vunpack.c.l.b16 %v531
        %v683 = vunpack.c.h.b16 %v531
        %v684 = vunpack.c.l.b16 %v532
        %v685 = vunpack.c.h.b16 %v532
        %v686 = vunpack.c.l.b16 %v533
        %v687 = vunpack.c.h.b16 %v533
        %v688 = vunpack.c.l.b16 %v534
        %v689 = vunpack.c.h.b16 %v534
        %v690 = vunpack.c.l.b16 %v535
        %v691 = vunpack.c.h.b16 %v535
        %v692 = vunpack.c.l.b16 %v536
        %v693 = vunpack.c.h.b16 %v536
        %v694 = vunpack.c.l.b16 %v537
        %v695 = vunpack.c.h.b16 %v537
        %v696 = vunpack.c.l.b16 %v538
        %v697 = vunpack.c.h.b16 %v538
        %v698 = vunpack.c.l.b16 %v539
        %v699 = vunpack.c.h.b16 %v539
        %v700 = vunpack.c.l.b16 %v540
        %v701 = vunpack.c.h.b16 %v540
        %v702 = vunpack.c.l.b16 %v541
        %v703 = vunpack.c.h.b16 %v541
        %v704 = vunpack.c.l.b16 %v542
        %v705 = vunpack.c.h.b16 %v542
        %v706 = vunpack.c.l.b16 %v543
        %v707 = vunpack.c.h.b16 %v543
        %v708 = vunpack.c.l.b16 %v544
        %v709 = vunpack.c.h.b16 %v544
        %v710 = vunpack.c.l.b16 %v545
        %v711 = vunpack.c.h.b16 %v545
        %v712 = vunpack.c.l.b16 %v546
        %v713 = vunpack.c.h.b16 %v546
        %v714 = vunpack.c.l.b16 %v547
        %v715 = vunpack.c.h.b16 %v547
        %v716 = vunpack.c.l.b16 %v548
        %v717 = vunpack.c.h.b16 %v548
        %v718 = vunpack.c.l.b16 %v549
        %v719 = vunpack.c.h.b16 %v549
        %v720 = vunpack.c.l.b16 %v550
        %v721 = vunpack.c.h.b16 %v550
        %v722 = vunpack.c.l.b16 %v551
        %v723 = vunpack.c.h.b16 %v551
        %v724 = vunpack.c.l.b16 %v552
        %v725 = vunpack.c.h.b16 %v552
        %v726 = vunpack.c.l.b16 %v553
        %v727 = vunpack.c.h.b16 %v553
        %v728 = vunpack.c.l.b16 %v554
        %v729 = vunpack.c.h.b16 %v554
        %v730 = vunpack.c.l.b16 %v555
        %v731 = vunpack.c.h.b16 %v555
        %v732 = vunpack.c.l.b16 %v556
        %v733 = vunpack.c.h.b16 %v556
        %v734 = vunpack.c.l.b16 %v557
        %v735 = vunpack.c.h.b16 %v557
        %v736 = vunpack.c.l.b16 %v558
        %v737 = vunpack.c.h.b16 %v558
        %v738 = vunpack.c.l.b16 %v559
        %v739 = vunpack.c.h.b16 %v559
        %v740 = vunpack.c.l.b16 %v560
        %v741 = vunpack.c.h.b16 %v560
        %v742 = vunpack.c.l.b16 %v561
        %v743 = vunpack.c.h.b16 %v561
        %v744 = vunpack.c.l.b16 %v562
        %v745 = vunpack.c.h.b16 %v562
        %v746 = vunpack.c.l.b16 %v563
        %v747 = vunpack.c.h.b16 %v563
        %v748 = vunpack.c.l.b16 %v564
        %v749 = vunpack.c.h.b16 %v564
        %v750 = vunpack.c.l.b16 %v565
        %v751 = vunpack.c.h.b16 %v565
        %v752 = vunpack.c.l.b16 %v566
        %v753 = vunpack.c.h.b16 %v566
        %v754 = vunpack.c.l.b16 %v567
        %v755 = vunpack.c.h.b16 %v567
        %v756 = vunpack.c.l.b16 %v568
        %v757 = vunpack.c.h.b16 %v568
        %v758 = vunpack.c.l.b16 %v569
        %v759 = vunpack.c.h.b16 %v569
        %v760 = vunpack.c.l.b16 %v570
        %v761 = vunpack.c.h.b16 %v570
        %v762 = vunpack.c.l.b16 %v571
        %v763 = vunpack.c.h.b16 %v571
        %v764 = vunpack.c.l.b16 %v572
        %v765 = vunpack.c.h.b16 %v572
        %v766 = vunpack.c.l.b16 %v573
        %v767 = vunpack.c.h.b16 %v573
        %v768 = vunpack.c.l.b16 %v574
        %v769 = vunpack.c.h.b16 %v574
        %v770 = vunpack.c.l.b16 %v575
        %v771 = vunpack.c.h.b16 %v575
        %v772 = vunpack.c.l.b16 %v576
        %v773 = vunpack.c.h.b16 %v576
        %v774 = vunpack.c.l.b16 %v577
        %v775 = vunpack.c.h.b16 %v577
        %v776 = vunpack.c.l.b16 %v578
        %v777 = vunpack.c.h.b16 %v578
        %v778 = vunpack.c.l.b16 %v579
        %v779 = vunpack.c.h.b16 %v579
        %v780 = vunpack.c.l.b16 %v580
        %v781 = vunpack.c.h.b16 %v580
        %v782 = vunpack.c.l.b16 %v581
        %v783 = vunpack.c.h.b16 %v581
        %v784 = vunpack.c.l.b16 %v582
        %v785 = vunpack.c.h.b16 %v582
        %v786 = vunpack.c.l.b16 %v583
        %v787 = vunpack.c.h.b16 %v583
        %v788 = vunpack.c.l.b16 %v584
        %v789 = vunpack.c.h.b16 %v584
        %v790 = vunpack.c.l.b16 %v585
        %v791 = vunpack.c.h.b16 %v585
        %v792 = vunpack.c.l.b16 %v586
        %v793 = vunpack.c.h.b16 %v586
        %v794 = vunpack.c.l.b16 %v587
        %v795 = vunpack.c.h.b16 %v587
        %v796 = vunpack.c.l.b16 %v588
        %v797 = vunpack.c.h.b16 %v588
        %v798 = vunpack.c.l.b16 %v589
        %v799 = vunpack.c.h.b16 %v589
        %v800 = vunpack.c.l.b16 %v590
        %v801 = vunpack.c.h.b16 %v590
        %v802 = vunpack.c.l.b16 %v591
        %v803 = vunpack.c.h.b16 %v591
        %v804 = vunpack.c.l.b16 %v592
        %v805 = vunpack.c.h.b16 %v592
        %v806 = vunpack.c.l.b16 %v593
        %v807 = vunpack.c.h.b16 %v593
        %v808 = vpack.c.b16 %v684, %v680
        %v809 = vpack.c.b16 %v685, %v681
        %v810 = vpack.c.b16 %v686, %v682
        %v811 = vpack.c.b16 %v687, %v683
        %v812 = vpack.c.b16 %v692, %v688
        %v813 = vpack.c.b16 %v693, %v689
        %v814 = vpack.c.b16 %v694, %v690
        %v815 = vpack.c.b16 %v695, %v691
        %v816 = vpack.c.b16 %v700, %v696
        %v817 = vpack.c.b16 %v701, %v697
        %v818 = vpack.c.b16 %v702, %v698
        %v819 = vpack.c.b16 %v703, %v699
        %v820 = vpack.c.b16 %v708, %v704
        %v821 = vpack.c.b16 %v709, %v705
        %v822 = vpack.c.b16 %v710, %v706
        %v823 = vpack.c.b16 %v711, %v707
        %v824 = vpack.c.b16 %v716, %v712
        %v825 = vpack.c.b16 %v717, %v713
        %v826 = vpack.c.b16 %v718, %v714
        %v827 = vpack.c.b16 %v719, %v715
        %v828 = vpack.c.b16 %v724, %v720
        %v829 = vpack.c.b16 %v725, %v721
        %v830 = vpack.c.b16 %v726, %v722
        %v831 = vpack.c.b16 %v727, %v723
        %v832 = vpack.c.b16 %v732, %v728
        %v833 = vpack.c.b16 %v733, %v729
        %v834 = vpack.c.b16 %v734, %v730
        %v835 = vpack.c.b16 %v735, %v731
        %v836 = vpack.c.b16 %v740, %v736
        %v837 = vpack.c.b16 %v741, %v737
        %v838 = vpack.c.b16 %v742, %v738
        %v839 = vpack.c.b16 %v743, %v739
        %v840 = vpack.c.b16 %v748, %v744
        %v841 = vpack.c.b16 %v749, %v745
        %v842 = vpack.c.b16 %v750, %v746
        %v843 = vpack.c.b16 %v751, %v747
        %v844 = vpack.c.b16 %v756, %v752
        %v845 = vpack.c.b16 %v757, %v753
        %v846 = vpack.c.b16 %v758, %v754
        %v847 = vpack.c.b16 %v759, %v755
        %v848 = vpack.c.b16 %v764, %v760
        %v849 = vpack.c.b16 %v765, %v761
        %v850 = vpack.c.b16 %v766, %v762
        %v851 = vpack.c.b16 %v767, %v763
        %v852 = vpack.c.b16 %v772, %v768
        %v853 = vpack.c.b16 %v773, %v769
        %v854 = vpack.c.b16 %v774, %v770
        %v855 = vpack.c.b16 %v775, %v771
        %v856 = vpack.c.b16 %v780, %v776
        %v857 = vpack.c.b16 %v781, %v777
        %v858 = vpack.c.b16 %v782, %v778
        %v859 = vpack.c.b16 %v783, %v779
        %v860 = vpack.c.b16 %v788, %v784
        %v861 = vpack.c.b16 %v789, %v785
        %v862 = vpack.c.b16 %v790, %v786
        %v863 = vpack.c.b16 %v791, %v787
        %v864 = vpack.c.b16 %v796, %v792
        %v865 = vpack.c.b16 %v797, %v793
        %v866 = vpack.c.b16 %v798, %v794
        %v867 = vpack.c.b16 %v799, %v795
        %v868 = vpack.c.b16 %v804, %v800
        %v869 = vpack.c.b16 %v805, %v801
        %v870 = vpack.c.b16 %v806, %v802
        %v871 = vpack.c.b16 %v807, %v803
        %936 = vmatprep.subr.bf16.mxu0 %v809
        %937 = vmatpush1.bf16.msra.mxu0 %v808
        %938 = vmatprep.subr.bf16.mxu0 %v813
        %939 = vmatpush1.bf16.msra.mxu0 %v812
        %940 = vmatprep.subr.bf16.mxu0 %v817
        %941 = vmatpush1.bf16.msra.mxu0 %v816
        %942 = vmatprep.subr.bf16.mxu0 %v821
        %943 = vmatpush1.bf16.msra.mxu0 %v820
        %944 = vmatprep.subr.bf16.mxu0 %v825
        %945 = vmatpush1.bf16.msra.mxu0 %v824
        %946 = vmatprep.subr.bf16.mxu0 %v829
        %947 = vmatpush1.bf16.msra.mxu0 %v828
        %948 = vmatprep.subr.bf16.mxu0 %v833
        %949 = vmatpush1.bf16.msra.mxu0 %v832
        %950 = vmatprep.subr.bf16.mxu0 %v837
        %951 = vmatpush1.bf16.msra.mxu0 %v836
        %952 = vmatprep.subr.bf16.mxu0 %v841
        %953 = vmatpush1.bf16.msra.mxu0 %v840
        %954 = vmatprep.subr.bf16.mxu0 %v845
        %955 = vmatpush1.bf16.msra.mxu0 %v844
        %956 = vmatprep.subr.bf16.mxu0 %v849
        %957 = vmatpush1.bf16.msra.mxu0 %v848
        %958 = vmatprep.subr.bf16.mxu0 %v853
        %959 = vmatpush1.bf16.msra.mxu0 %v852
        %960 = vmatprep.subr.bf16.mxu0 %v857
        %961 = vmatpush1.bf16.msra.mxu0 %v856
        %962 = vmatprep.subr.bf16.mxu0 %v861
        %963 = vmatpush1.bf16.msra.mxu0 %v860
        %964 = vmatprep.subr.bf16.mxu0 %v865
        %965 = vmatpush1.bf16.msra.mxu0 %v864
        %966 = vmatprep.subr.bf16.mxu0 %v869
        %967 = vmatpush1.bf16.msra.mxu0 %v868
        %968 = vmatprep.mubr.bf16.mxu0 %v515
        %969 = vmatmul.mubr.bf16.gmra.mrb[0].mxu0 %v514
        %v970 = vpop.f32.mrb[0].mxu0
        %v971 = vadd.f32 %v599, %v970
        %v972 = vpop.f32.mrb[0].mxu0
        %v973 = vadd.f32 %v603, %v972
        %v974 = vpop.f32.mrb[0].mxu0
        %v975 = vadd.f32 %v599, %v974
        %v976 = vpop.f32.mrb[0].mxu0
        %v977 = vadd.f32 %v603, %v976
        %978 = vmatprep.mubr.bf16.mxu0 %v517
        %979 = vmatmul.mubr.bf16.gmra.mrb[0].mxu0 %v516
        %v980 = vpop.f32.mrb[0].mxu0
        %v981 = vadd.f32 %v599, %v980
        %v982 = vpop.f32.mrb[0].mxu0
        %v983 = vadd.f32 %v603, %v982
        %v984 = vpop.f32.mrb[0].mxu0
        %v985 = vadd.f32 %v599, %v984
        %v986 = vpop.f32.mrb[0].mxu0
        %v987 = vadd.f32 %v603, %v986
        %988 = vmatprep.mubr.bf16.mxu0 %v519
        %989 = vmatmul.mubr.bf16.gmra.mrb[0].mxu0 %v518
        %v990 = vpop.f32.mrb[0].mxu0
        %v991 = vadd.f32 %v599, %v990
        %v992 = vpop.f32.mrb[0].mxu0
        %v993 = vadd.f32 %v603, %v992
        %v994 = vpop.f32.mrb[0].mxu0
        %v995 = vadd.f32 %v599, %v994
        %v996 = vpop.f32.mrb[0].mxu0
        %v997 = vadd.f32 %v603, %v996
        %998 = vmatprep.mubr.bf16.mxu0 %v521
        %999 = vmatmul.mubr.bf16.gmra.mrb[0].mxu0 %v520
        %v1000 = vpop.f32.mrb[0].mxu0
        %v1001 = vadd.f32 %v599, %v1000
        %v1002 = vpop.f32.mrb[0].mxu0
        %v1003 = vadd.f32 %v603, %v1002
        %v1004 = vpop.f32.mrb[0].mxu0
        %v1005 = vadd.f32 %v599, %v1004
        %v1006 = vpop.f32.mrb[0].mxu0
        %v1007 = vadd.f32 %v603, %v1006
        %1008 = vmatprep.mubr.bf16.mxu0 %v523
        %1009 = vmatmul.mubr.bf16.gmra.mrb[0].mxu0 %v522
        %v1010 = vpop.f32.mrb[0].mxu0
        %v1011 = vadd.f32 %v599, %v1010
        %v1012 = vpop.f32.mrb[0].mxu0
        %v1013 = vadd.f32 %v603, %v1012
        %v1014 = vpop.f32.mrb[0].mxu0
        %v1015 = vadd.f32 %v599, %v1014
        %v1016 = vpop.f32.mrb[0].mxu0
        %v1017 = vadd.f32 %v603, %v1016
        %1018 = vmatprep.mubr.bf16.mxu0 %v525
        %1019 = vmatmul.mubr.bf16.gmra.mrb[0].mxu0 %v524
        %v1020 = vpop.f32.mrb[0].mxu0
        %v1021 = vadd.f32 %v599, %v1020
        %v1022 = vpop.f32.mrb[0].mxu0
        %v1023 = vadd.f32 %v603, %v1022
        %v1024 = vpop.f32.mrb[0].mxu0
        %v1025 = vadd.f32 %v599, %v1024
        %v1026 = vpop.f32.mrb[0].mxu0
        %v1027 = vadd.f32 %v603, %v1026
        %1028 = vmatprep.mubr.bf16.mxu0 %v527
        %1029 = vmatmul.mubr.bf16.gmra.mrb[0].mxu0 %v526
        %v1030 = vpop.f32.mrb[0].mxu0
        %v1031 = vadd.f32 %v599, %v1030
        %v1032 = vpop.f32.mrb[0].mxu0
        %v1033 = vadd.f32 %v603, %v1032
        %v1034 = vpop.f32.mrb[0].mxu0
        %v1035 = vadd.f32 %v599, %v1034
        %v1036 = vpop.f32.mrb[0].mxu0
        %v1037 = vadd.f32 %v603, %v1036
        %1038 = vmatprep.mubr.bf16.mxu0 %v529
        %1039 = vmatmul.mubr.bf16.gmra.mrb[0].mxu0 %v528
        %v1040 = vpop.f32.mrb[0].mxu0
        %v1041 = vadd.f32 %v599, %v1040
        %v1042 = vpop.f32.mrb[0].mxu0
        %v1043 = vadd.f32 %v603, %v1042
        %v1044 = vpop.f32.mrb[0].mxu0
        %v1045 = vadd.f32 %v599, %v1044
        %v1046 = vpop.f32.mrb[0].mxu0
        %v1047 = vadd.f32 %v603, %v1046
        %1048 = vdwg.mxu0
        %1049 = vmatprep.subr.bf16.mxu0 %v811
        %1050 = vmatpush1.bf16.msra.mxu0 %v810
        %1051 = vmatprep.subr.bf16.mxu0 %v815
        %1052 = vmatpush1.bf16.msra.mxu0 %v814
        %1053 = vmatprep.subr.bf16.mxu0 %v819
        %1054 = vmatpush1.bf16.msra.mxu0 %v818
        %1055 = vmatprep.subr.bf16.mxu0 %v823
        %1056 = vmatpush1.bf16.msra.mxu0 %v822
        %1057 = vmatprep.subr.bf16.mxu0 %v827
        %1058 = vmatpush1.bf16.msra.mxu0 %v826
        %1059 = vmatprep.subr.bf16.mxu0 %v831
        %1060 = vmatpush1.bf16.msra.mxu0 %v830
        %1061 = vmatprep.subr.bf16.mxu0 %v835
        %1062 = vmatpush1.bf16.msra.mxu0 %v834
        %1063 = vmatprep.subr.bf16.mxu0 %v839
        %1064 = vmatpush1.bf16.msra.mxu0 %v838
        %1065 = vmatprep.subr.bf16.mxu0 %v843
        %1066 = vmatpush1.bf16.msra.mxu0 %v842
        %1067 = vmatprep.subr.bf16.mxu0 %v847
        %1068 = vmatpush1.bf16.msra.mxu0 %v846
        %1069 = vmatprep.subr.bf16.mxu0 %v851
        %1070 = vmatpush1.bf16.msra.mxu0 %v850
        %1071 = vmatprep.subr.bf16.mxu0 %v855
        %1072 = vmatpush1.bf16.msra.mxu0 %v854
        %1073 = vmatprep.subr.bf16.mxu0 %v859
        %1074 = vmatpush1.bf16.msra.mxu0 %v858
        %1075 = vmatprep.subr.bf16.mxu0 %v863
        %1076 = vmatpush1.bf16.msra.mxu0 %v862
        %1077 = vmatprep.subr.bf16.mxu0 %v867
        %1078 = vmatpush1.bf16.msra.mxu0 %v866
        %1079 = vmatprep.subr.bf16.mxu0 %v871
        %1080 = vmatpush1.bf16.msra.mxu0 %v870
        %1081 = vmatprep.mubr.bf16.mxu0 %v515
        %1082 = vmatmul.mubr.bf16.gmra.mrb[0].mxu0 %v514
        %v1083 = vpop.f32.mrb[0].mxu0
        %v1084 = vadd.f32 %v607, %v1083
        %v1085 = vpop.f32.mrb[0].mxu0
        %v1086 = vadd.f32 %v611, %v1085
        %v1087 = vpop.f32.mrb[0].mxu0
        %v1088 = vadd.f32 %v607, %v1087
        %v1089 = vpop.f32.mrb[0].mxu0
        %v1090 = vadd.f32 %v611, %v1089
        %1091 = vmatprep.mubr.bf16.mxu0 %v517
        %1092 = vmatmul.mubr.bf16.gmra.mrb[0].mxu0 %v516
        %v1093 = vpop.f32.mrb[0].mxu0
        %v1094 = vadd.f32 %v607, %v1093
        %v1095 = vpop.f32.mrb[0].mxu0
        %v1096 = vadd.f32 %v611, %v1095
        %v1097 = vpop.f32.mrb[0].mxu0
        %v1098 = vadd.f32 %v607, %v1097
        %v1099 = vpop.f32.mrb[0].mxu0
        %v1100 = vadd.f32 %v611, %v1099
        %1101 = vmatprep.mubr.bf16.mxu0 %v519
        %1102 = vmatmul.mubr.bf16.gmra.mrb[0].mxu0 %v518
        %v1103 = vpop.f32.mrb[0].mxu0
        %v1104 = vadd.f32 %v607, %v1103
        %v1105 = vpop.f32.mrb[0].mxu0
        %v1106 = vadd.f32 %v611, %v1105
        %v1107 = vpop.f32.mrb[0].mxu0
        %v1108 = vadd.f32 %v607, %v1107
        %v1109 = vpop.f32.mrb[0].mxu0
        %v1110 = vadd.f32 %v611, %v1109
        %1111 = vmatprep.mubr.bf16.mxu0 %v521
        %1112 = vmatmul.mubr.bf16.gmra.mrb[0].mxu0 %v520
        %v1113 = vpop.f32.mrb[0].mxu0
        %v1114 = vadd.f32 %v607, %v1113
        %v1115 = vpop.f32.mrb[0].mxu0
        %v1116 = vadd.f32 %v611, %v1115
        %v1117 = vpop.f32.mrb[0].mxu0
        %v1118 = vadd.f32 %v607, %v1117
        %v1119 = vpop.f32.mrb[0].mxu0
        %v1120 = vadd.f32 %v611, %v1119
        %1121 = vmatprep.mubr.bf16.mxu0 %v523
        %1122 = vmatmul.mubr.bf16.gmra.mrb[0].mxu0 %v522
        %v1123 = vpop.f32.mrb[0].mxu0
        %v1124 = vadd.f32 %v607, %v1123
        %v1125 = vpop.f32.mrb[0].mxu0
        %v1126 = vadd.f32 %v611, %v1125
        %v1127 = vpop.f32.mrb[0].mxu0
        %v1128 = vadd.f32 %v607, %v1127
        %v1129 = vpop.f32.mrb[0].mxu0
        %v1130 = vadd.f32 %v611, %v1129
        %1131 = vmatprep.mubr.bf16.mxu0 %v525
        %1132 = vmatmul.mubr.bf16.gmra.mrb[0].mxu0 %v524
        %v1133 = vpop.f32.mrb[0].mxu0
        %v1134 = vadd.f32 %v607, %v1133
        %v1135 = vpop.f32.mrb[0].mxu0
        %v1136 = vadd.f32 %v611, %v1135
        %v1137 = vpop.f32.mrb[0].mxu0
        %v1138 = vadd.f32 %v607, %v1137
        %v1139 = vpop.f32.mrb[0].mxu0
        %v1140 = vadd.f32 %v611, %v1139
        %1141 = vmatprep.mubr.bf16.mxu0 %v527
        %1142 = vmatmul.mubr.bf16.gmra.mrb[0].mxu0 %v526
        %v1143 = vpop.f32.mrb[0].mxu0
        %v1144 = vadd.f32 %v607, %v1143
        %v1145 = vpop.f32.mrb[0].mxu0
        %v1146 = vadd.f32 %v611, %v1145
        %v1147 = vpop.f32.mrb[0].mxu0
        %v1148 = vadd.f32 %v607, %v1147
        %v1149 = vpop.f32.mrb[0].mxu0
        %v1150 = vadd.f32 %v611, %v1149
        %1151 = vmatprep.mubr.bf16.mxu0 %v529
        %1152 = vmatmul.mubr.bf16.gmra.mrb[0].mxu0 %v528
        %v1153 = vpop.f32.mrb[0].mxu0
        %v1154 = vadd.f32 %v607, %v1153
        %v1155 = vpop.f32.mrb[0].mxu0
        %v1156 = vadd.f32 %v611, %v1155
        %v1157 = vpop.f32.mrb[0].mxu0
        %v1158 = vadd.f32 %v607, %v1157
        %v1159 = vpop.f32.mrb[0].mxu0
        %v1160 = vadd.f32 %v611, %v1159
        %1161 = vdwg.mxu0
        %v1162 = vpack.c.bf16 %v975, %v971
        %v1163 = vpack.c.bf16 %v977, %v973
        %v1164 = vpack.c.bf16 %v1088, %v1084
        %v1165 = vpack.c.bf16 %v1090, %v1086
        %v1166 = vpack.c.bf16 %v985, %v981
        %v1167 = vpack.c.bf16 %v987, %v983
        %v1168 = vpack.c.bf16 %v1098, %v1094
        %v1169 = vpack.c.bf16 %v1100, %v1096
        %v1170 = vpack.c.bf16 %v995, %v991
        %v1171 = vpack.c.bf16 %v997, %v993
        %v1172 = vpack.c.bf16 %v1108, %v1104
        %v1173 = vpack.c.bf16 %v1110, %v1106
        %v1174 = vpack.c.bf16 %v1005, %v1001
        %v1175 = vpack.c.bf16 %v1007, %v1003
        %v1176 = vpack.c.bf16 %v1118, %v1114
        %v1177 = vpack.c.bf16 %v1120, %v1116
        %v1178 = vpack.c.bf16 %v1015, %v1011
        %v1179 = vpack.c.bf16 %v1017, %v1013
        %v1180 = vpack.c.bf16 %v1128, %v1124
        %v1181 = vpack.c.bf16 %v1130, %v1126
        %v1182 = vpack.c.bf16 %v1025, %v1021
        %v1183 = vpack.c.bf16 %v1027, %v1023
        %v1184 = vpack.c.bf16 %v1138, %v1134
        %v1185 = vpack.c.bf16 %v1140, %v1136
        %v1186 = vpack.c.bf16 %v1035, %v1031
        %v1187 = vpack.c.bf16 %v1037, %v1033
        %v1188 = vpack.c.bf16 %v1148, %v1144
        %v1189 = vpack.c.bf16 %v1150, %v1146
        %v1190 = vpack.c.bf16 %v1045, %v1041
        %v1191 = vpack.c.bf16 %v1047, %v1043
        %v1192 = vpack.c.bf16 %v1158, %v1154
        %v1193 = vpack.c.bf16 %v1160, %v1156
        %v1226 = vunpack.c.l.b16 %v1162
        %v1227 = vunpack.c.l.b16 %v1163
        %v1228 = vunpack.c.l.b16 %v1164
        %v1229 = vunpack.c.l.b16 %v1165
        %v1230 = vunpack.c.h.b16 %v1162
        %v1231 = vunpack.c.h.b16 %v1163
        %v1232 = vunpack.c.h.b16 %v1164
        %v1233 = vunpack.c.h.b16 %v1165
        %v1234 = vunpack.c.l.b16 %v1166
        %v1235 = vunpack.c.l.b16 %v1167
        %v1236 = vunpack.c.l.b16 %v1168
        %v1237 = vunpack.c.l.b16 %v1169
        %v1238 = vunpack.c.h.b16 %v1166
        %v1239 = vunpack.c.h.b16 %v1167
        %v1240 = vunpack.c.h.b16 %v1168
        %v1241 = vunpack.c.h.b16 %v1169
        %v1242 = vunpack.c.l.b16 %v1170
        %v1243 = vunpack.c.l.b16 %v1171
        %v1244 = vunpack.c.l.b16 %v1172
        %v1245 = vunpack.c.l.b16 %v1173
        %v1246 = vunpack.c.h.b16 %v1170
        %v1247 = vunpack.c.h.b16 %v1171
        %v1248 = vunpack.c.h.b16 %v1172
        %v1249 = vunpack.c.h.b16 %v1173
        %v1250 = vunpack.c.l.b16 %v1174
        %v1251 = vunpack.c.l.b16 %v1175
        %v1252 = vunpack.c.l.b16 %v1176
        %v1253 = vunpack.c.l.b16 %v1177
        %v1254 = vunpack.c.h.b16 %v1174
        %v1255 = vunpack.c.h.b16 %v1175
        %v1256 = vunpack.c.h.b16 %v1176
        %v1257 = vunpack.c.h.b16 %v1177
        %v1258 = vunpack.c.l.b16 %v1178
        %v1259 = vunpack.c.l.b16 %v1179
        %v1260 = vunpack.c.l.b16 %v1180
        %v1261 = vunpack.c.l.b16 %v1181
        %v1262 = vunpack.c.h.b16 %v1178
        %v1263 = vunpack.c.h.b16 %v1179
        %v1264 = vunpack.c.h.b16 %v1180
        %v1265 = vunpack.c.h.b16 %v1181
        %v1266 = vunpack.c.l.b16 %v1182
        %v1267 = vunpack.c.l.b16 %v1183
        %v1268 = vunpack.c.l.b16 %v1184
        %v1269 = vunpack.c.l.b16 %v1185
        %v1270 = vunpack.c.h.b16 %v1182
        %v1271 = vunpack.c.h.b16 %v1183
        %v1272 = vunpack.c.h.b16 %v1184
        %v1273 = vunpack.c.h.b16 %v1185
        %v1274 = vunpack.c.l.b16 %v1186
        %v1275 = vunpack.c.l.b16 %v1187
        %v1276 = vunpack.c.l.b16 %v1188
        %v1277 = vunpack.c.l.b16 %v1189
        %v1278 = vunpack.c.h.b16 %v1186
        %v1279 = vunpack.c.h.b16 %v1187
        %v1280 = vunpack.c.h.b16 %v1188
        %v1281 = vunpack.c.h.b16 %v1189
        %v1282 = vunpack.c.l.b16 %v1190
        %v1283 = vunpack.c.l.b16 %v1191
        %v1284 = vunpack.c.l.b16 %v1192
        %v1285 = vunpack.c.l.b16 %v1193
        %v1286 = vunpack.c.h.b16 %v1190
        %v1287 = vunpack.c.h.b16 %v1191
        %v1288 = vunpack.c.h.b16 %v1192
        %v1289 = vunpack.c.h.b16 %v1193
        %v1290 = vpack.c.b16 %v1227, %v1226
        %v1291 = vpack.c.b16 %v1229, %v1228
        %v1292 = vpack.c.b16 %v1231, %v1230
        %v1293 = vpack.c.b16 %v1233, %v1232
        %v1294 = vpack.c.b16 %v1235, %v1234
        %v1295 = vpack.c.b16 %v1237, %v1236
        %v1296 = vpack.c.b16 %v1239, %v1238
        %v1297 = vpack.c.b16 %v1241, %v1240
        %v1298 = vpack.c.b16 %v1243, %v1242
        %v1299 = vpack.c.b16 %v1245, %v1244
        %v1300 = vpack.c.b16 %v1247, %v1246
        %v1301 = vpack.c.b16 %v1249, %v1248
        %v1302 = vpack.c.b16 %v1251, %v1250
        %v1303 = vpack.c.b16 %v1253, %v1252
        %v1304 = vpack.c.b16 %v1255, %v1254
        %v1305 = vpack.c.b16 %v1257, %v1256
        %v1306 = vpack.c.b16 %v1259, %v1258
        %v1307 = vpack.c.b16 %v1261, %v1260
        %v1308 = vpack.c.b16 %v1263, %v1262
        %v1309 = vpack.c.b16 %v1265, %v1264
        %v1310 = vpack.c.b16 %v1267, %v1266
        %v1311 = vpack.c.b16 %v1269, %v1268
        %v1312 = vpack.c.b16 %v1271, %v1270
        %v1313 = vpack.c.b16 %v1273, %v1272
        %v1314 = vpack.c.b16 %v1275, %v1274
        %v1315 = vpack.c.b16 %v1277, %v1276
        %v1316 = vpack.c.b16 %v1279, %v1278
        %v1317 = vpack.c.b16 %v1281, %v1280
        %v1318 = vpack.c.b16 %v1283, %v1282
        %v1319 = vpack.c.b16 %v1285, %v1284
        %v1320 = vpack.c.b16 %v1287, %v1286
        %v1321 = vpack.c.b16 %v1289, %v1288
        %1354 = vst [vmem:[%s222] sm:$0xff] %v1290
        %1355 = vst [vmem:[%s222 + $0x8] sm:$0xff] %v1291
        %1356 = vst [vmem:[%s222 + $0x10] sm:$0xff] %v1292
        %1357 = vst [vmem:[%s222 + $0x18] sm:$0xff] %v1293
        %1358 = vst [vmem:[%s222 + $0x20] sm:$0xff] %v1294
        %1359 = vst [vmem:[%s222 + $0x28] sm:$0xff] %v1295
        %1360 = vst [vmem:[%s222 + $0x30] sm:$0xff] %v1296
        %1361 = vst [vmem:[%s222 + $0x38] sm:$0xff] %v1297
        %1362 = vst [vmem:[%s222 + $0x40] sm:$0xff] %v1298
        %1363 = vst [vmem:[%s222 + $0x48] sm:$0xff] %v1299
        %1364 = vst [vmem:[%s222 + $0x50] sm:$0xff] %v1300
        %1365 = vst [vmem:[%s222 + $0x58] sm:$0xff] %v1301
        %1366 = vst [vmem:[%s222 + $0x60] sm:$0xff] %v1302
        %1367 = vst [vmem:[%s222 + $0x68] sm:$0xff] %v1303
        %1368 = vst [vmem:[%s222 + $0x70] sm:$0xff] %v1304
        %1369 = vst [vmem:[%s222 + $0x78] sm:$0xff] %v1305
        %1370 = vst [vmem:[%s222 + $0x80] sm:$0xff] %v1306
        %1371 = vst [vmem:[%s222 + $0x88] sm:$0xff] %v1307
        %1372 = vst [vmem:[%s222 + $0x90] sm:$0xff] %v1308
        %1373 = vst [vmem:[%s222 + $0x98] sm:$0xff] %v1309
        %1374 = vst [vmem:[%s222 + $0xa0] sm:$0xff] %v1310
        %1375 = vst [vmem:[%s222 + $0xa8] sm:$0xff] %v1311
        %1376 = vst [vmem:[%s222 + $0xb0] sm:$0xff] %v1312
        %1377 = vst [vmem:[%s222 + $0xb8] sm:$0xff] %v1313
        %1378 = vst [vmem:[%s222 + $0xc0] sm:$0xff] %v1314
        %1379 = vst [vmem:[%s222 + $0xc8] sm:$0xff] %v1315
        %1380 = vst [vmem:[%s222 + $0xd0] sm:$0xff] %v1316
        %1381 = vst [vmem:[%s222 + $0xd8] sm:$0xff] %v1317
        %1382 = vst [vmem:[%s222 + $0xe0] sm:$0xff] %v1318
        %1383 = vst [vmem:[%s222 + $0xe8] sm:$0xff] %v1319
        %1384 = vst [vmem:[%s222 + $0xf0] sm:$0xff] %v1320
        %1385 = vst [vmem:[%s222 + $0xf8] sm:$0xff] %v1321
        %s1386 = sand.u32 %s113, 1
        %s1387 = scalar_lea.sflag [#allocation4], %s1386
        %s1388 = sand.u32 %s113, 1
        %s1389 = smul.addr %s1388, 256
        %s1390 = scalar_lea.vmem [#allocation7], %s1389
        // Predicated region
        $region41: #{tpu_custom_call.1} parent=31 // pred_check
          %p1391 = pneg %p123
        $region42: #{tpu_custom_call.1} parent=31 // pred_check_branch
          %1393 = sbr.rel (%p1391) target = $region44
        $region43: #{tpu_custom_call.1} parent=31 // pred_region
          %s1394 = smul.u32 16, %s26
          %s1396 = ssub.s32 4096, 4096
          %1397 = vsyncadd %s1387, %s1396
          %s1398 = smul.addr %s1394, 4
          %s1399 = smul.addr %s25, 64
          %s1400 = sadd.s32 %s1398, %s1399
          %s1401 = smul.addr %s1400, 64
          %s1402 = scalar_lea.hbm %s3, %s1401
          %s1403 = sshll.u32 %s1390, 4
          %s1404 = int_to_ptr.vmem [resolvable:$true] %s1403
          %1409 = dma.vmem_to_hbm [thread:$0]  %s1404, 4096, %s1402, %s1387, 256, 256, 16
        $region44: #{tpu_custom_call.1} parent=31 // pred_fallthru
          _
      $region32: #{tpu_custom_call.1} parent=5 // pred_fallthru
        _
      %p1410 = scmp.le.s32.totalorder 2, %s16
      // Predicated region
      $region45: #{tpu_custom_call.1} parent=5 // pred_check
        %p1411 = pneg %p1410
      $region46: #{tpu_custom_call.1} parent=5 // pred_check_branch
        %1413 = sbr.rel (%p1411) target = $region48
      $region47: #{tpu_custom_call.1} parent=5 // pred_region
        %s1414 = ssub.s32 %s16, 2
        // Predicated region
        $region49: #{tpu_custom_call.1} parent=47 // pred_check
          %p1415 = pneg %p129
        $region50: #{tpu_custom_call.1} parent=47 // pred_check_branch
          %1417 = sbr.rel (%p1415) target = $region52
        $region51: #{tpu_custom_call.1} parent=47 // pred_region
          %s1418 = sand.u32 %s114, 1
          %s1419 = scalar_lea.sflag [#allocation4], %s1418
          %s1420 = sand.u32 %s114, 1
          %s1421 = smul.addr %s1420, 256
          %s1422 = scalar_lea.vmem [#allocation7], %s1421
          %1423 = dma.done %s1419, 4096
        $region52: #{tpu_custom_call.1} parent=47 // pred_fallthru
          _
      $region48: #{tpu_custom_call.1} parent=5 // pred_fallthru
        _
    $region6: #{tpu_custom_call.1} parent=1 // loop_footer
      %s20 = sadd.s32 1, %s16
    $region7: #{tpu_custom_call.1} parent=1 // loop_footer_branch
      %15 = sbr.rel target = $region3
    $region8: #{tpu_custom_call.1} parent=1 // loop_exit
      _
    %1424 = vsyncpa [#allocation3], 1
    %s1425 = scalar_lea.sflag [#allocation3], 1
    %1426 = vsyncpa %s1425, 1
    %1427 = vsyncpa [#allocation6], 1
    %1428 = vsyncpa [#allocation4], 1
    %s1429 = scalar_lea.sflag [#allocation4], 1
    %1430 = vsyncpa %s1429, 1

</llo_original>
